<compile_context>
chip_gen: v7x
topology: tpu7x:2x2x1
jax: 0.10.0
libtpu: 0.0.40
codegen_flags: <defaults>
</compile_context>

<pallas_src>
import functools

import jax
import jax.numpy as jnp
from jax.experimental import pallas as pl
from jax.experimental.pallas import tpu as pltpu


# ----------------------------- host-side helpers -----------------------------

def get_group_size(channels, goal=8):
    # mirrors getGroupSize: largest divisor of `channels` that is <= goal
    g = min(goal, channels)
    while channels % g != 0:
        g -= 1
    return g


def group_avg_matrix(channels, num_groups):
    gs = channels // num_groups
    gid = jnp.arange(channels) // gs
    return (gid[:, None] == gid[None, :]).astype(jnp.float32) / gs  # (C, C)


def _round_up(v, m):
    return (v + m - 1) // m * m


def _cdiv(a, b):
    return -(-a // b)


# ----------------- kernel 1: streaming node / edge row-sum reduction -----------------

def stream_sum_kernel(x_ref, e_ref, p_ref, acc_x, acc_e, *,
                      n_rows, e_rows, tile_x, tile_e,
                      x_tiles, e_tiles, tiles_per_core):
    c = pl.program_id(0)                     # "parallel" core axis (both TCs on v7x)
    t = pl.program_id(1)                     # "arbitrary" reduction axis
    g = c * tiles_per_core + t               # global reduction-tile index

    @pl.when(t == 0)
    def _init():
        acc_x[...] = jnp.zeros_like(acc_x)
        acc_e[...] = jnp.zeros_like(acc_e)

    # ---- node stream ----
    last_x = x_tiles - 1

    @pl.when(g < last_x)                     # interior tiles: mask-free fast path
    def _acc_x_body():
        acc_x[...] += jnp.sum(x_ref[...].astype(jnp.float32), axis=0, keepdims=True)

    @pl.when(g == last_x)                    # final (possibly ragged) tile
    def _acc_x_tail():
        xs = x_ref[...].astype(jnp.float32)
        if n_rows % tile_x != 0:             # static: ragged -> mask OOB rows (select)
            ridx = jax.lax.broadcasted_iota(jnp.int32, (tile_x, 1), 0) + last_x * tile_x
            xs = jnp.where(ridx < n_rows, xs, 0.0)
        acc_x[...] += jnp.sum(xs, axis=0, keepdims=True)

    # ---- edge stream (own tile count; past-end tiles are skipped entirely) ----
    last_e = e_tiles - 1

    @pl.when(g < last_e)
    def _acc_e_body():
        acc_e[...] += jnp.sum(e_ref[...].astype(jnp.float32), axis=0, keepdims=True)

    @pl.when(g == last_e)
    def _acc_e_tail():
        es = e_ref[...].astype(jnp.float32)
        if e_rows % tile_e != 0:
            ridx = jax.lax.broadcasted_iota(jnp.int32, (tile_e, 1), 0) + last_e * tile_e
            es = jnp.where(ridx < e_rows, es, 0.0)
        acc_e[...] += jnp.sum(es, axis=0, keepdims=True)

    # ---- emit this core's partial sums ----
    @pl.when(t == pl.num_programs(1) - 1)
    def _emit():
        p_ref[0:1, :] = acc_x[...]           # row 0: node partial sum
        p_ref[1:2, :] = acc_e[...]           # row 1: edge partial sum


# ----------------------- kernel 2: one-shot MLP tail -----------------------

def mlp_tail_kernel(p_ref, u_ref,
                    a1_ref, g1_ref, b1_ref, w1_ref, bias1_ref,
                    a2_ref, g2_ref, b2_ref, w2_ref, bias2_ref,
                    o_ref, h_sc, *, inv_n, inv_e, ch, n_split):
    eps = 1e-5
    p = p_ref[...]                                   # (2*n_split, ch)
    sx = p[0:1, :]
    se = p[1:2, :]
    for c in range(1, n_split):                      # combine per-core partials
        sx = sx + p[2 * c:2 * c + 1, :]
        se = se + p[2 * c + 1:2 * c + 2, :]
    mx = sx * inv_n
    me = se * inv_e
    u = u_ref[...]

    # h = [u | mean(x) | mean(edge_attr)] via static lane-slice stores (no lane concat)
    h_sc[:, 0:ch] = u
    h_sc[:, ch:2 * ch] = mx
    h_sc[:, 2 * ch:3 * ch] = me
    h = h_sc[...]                                    # (1, 3*ch)

    # --- GroupNorm(3*ch) + ReLU (fused mu / E[h^2] dot; Dropout = identity in eval) ---
    hh = jnp.concatenate([h, h * h], axis=0)         # (2, 3*ch) sublane stack
    st = jnp.dot(hh, a1_ref[...], preferred_element_type=jnp.float32)
    mu, ex2 = st[0:1, :], st[1:2, :]
    var = jnp.maximum(ex2 - mu * mu, 0.0)            # clamp: avoids rsqrt(NaN) from cancellation
    hn = (h - mu) * jax.lax.rsqrt(var + eps) * g1_ref[...] + b1_ref[...]
    hn = jnp.maximum(hn, 0.0)

    # --- Linear(3*ch -> hidden) ---
    z = jnp.dot(hn, w1_ref[...], preferred_element_type=jnp.float32) + bias1_ref[...]

    # --- GroupNorm(hidden) + ReLU ---
    zz = jnp.concatenate([z, z * z], axis=0)
    st2 = jnp.dot(zz, a2_ref[...], preferred_element_type=jnp.float32)
    mu2, ex22 = st2[0:1, :], st2[1:2, :]
    var2 = jnp.maximum(ex22 - mu2 * mu2, 0.0)
    zn = (z - mu2) * jax.lax.rsqrt(var2 + eps) * g2_ref[...] + b2_ref[...]
    zn = jnp.maximum(zn, 0.0)

    # --- Linear(hidden -> ch) + residual ---
    out = jnp.dot(zn, w2_ref[...], preferred_element_type=jnp.float32) + bias2_ref[...]
    o_ref[...] = out + u


# ----------------------------- wrapper -----------------------------

def global_avg_func(x, edge_attr, u, params, *, max_tile_bytes=None, n_split=2):
    n, ch = x.shape
    e = edge_attr.shape[0]
    if n == 0 or e == 0:
        # torch.mean(dim=0) over an empty set is NaN; refuse instead of dividing by 0.
        raise ValueError(f"GlobalAvgFunc needs n>0 and e>0 (got n={n}, e={e})")
    c1 = 3 * ch
    hidden = params["w1"].shape[1]

    # ---------- per-generation tile / VMEM sizing ----------
    try:
        vmem_cap = int(pltpu.get_tpu_info().vmem_capacity_bytes)
    except Exception:
        vmem_cap = 64 << 20                       # conservative fallback (v7x per-core VMEM)
    if max_tile_bytes is None:
        # v5e / v6e (128 MiB VMEM): ~8 MiB streamed tiles; v7x (64 MiB): ~5 MiB.
        max_tile_bytes = (8 << 20) if vmem_cap >= (96 << 20) else (5 << 20)

    lane_w = _round_up(ch, 128)                   # VMEM lane footprint of one row
    cap_rows = max(8, (max_tile_bytes // (lane_w * 4)) // 8 * 8)

    def tile_rows_for(rows):
        # block rows: either a multiple of 8 (< rows, ragged tail masked in-kernel)
        # or the full (small) array dim -> always a legal TPU block shape.
        return rows if rows <= cap_rows else cap_rows

    tile_x = tile_rows_for(n)
    tile_e = tile_rows_for(e)
    x_tiles = _cdiv(n, tile_x)
    e_tiles = _cdiv(e, tile_e)
    total_tiles = max(x_tiles, e_tiles)
    tiles_per_core = _cdiv(total_tiles, n_split)

    # explicit VMEM budget: 2 streams x 2 pipeline buffers + small scratch/output + slack
    stream_buf_bytes = (tile_x + tile_e) * lane_w * 4
    vmem_need = 2 * stream_buf_bytes + (2 << 20)
    vmem_limit = int(min(max(vmem_need, 16 << 20), max(vmem_cap - (8 << 20), 16 << 20)))

    # ---------- kernel 1: streaming reduction (no host-side copies of x / edge_attr) ----------
    sum_kernel = functools.partial(
        stream_sum_kernel,
        n_rows=n, e_rows=e, tile_x=tile_x, tile_e=tile_e,
        x_tiles=x_tiles, e_tiles=e_tiles, tiles_per_core=tiles_per_core)

    partials = pl.pallas_call(
        sum_kernel,
        out_shape=jax.ShapeDtypeStruct((n_split, 2, ch), jnp.float32),
        grid_spec=pltpu.PrefetchScalarGridSpec(
            num_scalar_prefetch=0,
            grid=(n_split, tiles_per_core),
            in_specs=[
                # clamped index maps: past a stream's end the block index stays constant,
                # so the pipeline re-uses the resident buffer instead of streaming zeros.
                pl.BlockSpec((tile_x, ch),
                             lambda c, t: (jnp.minimum(c * tiles_per_core + t, x_tiles - 1), 0)),
                pl.BlockSpec((tile_e, ch),
                             lambda c, t: (jnp.minimum(c * tiles_per_core + t, e_tiles - 1), 0)),
            ],
            out_specs=pl.BlockSpec((None, 2, ch), lambda c, t: (c, 0, 0)),
            scratch_shapes=[pltpu.VMEM((1, ch), jnp.float32),   # node-sum accumulator
                            pltpu.VMEM((1, ch), jnp.float32)],  # edge-sum accumulator
        ),
        compiler_params=pltpu.CompilerParams(
            dimension_semantics=("parallel", "arbitrary"),
            vmem_limit_bytes=vmem_limit,
        ),
    )(x, edge_attr)

    # ---------- kernel 2: tiny one-shot MLP tail (params loaded once, not pipelined) ----------
    tail_kernel = functools.partial(
        mlp_tail_kernel, inv_n=1.0 / n, inv_e=1.0 / e, ch=ch, n_split=n_split)

    def const_spec(shape):
        return pl.BlockSpec(shape, lambda i: (0,) * len(shape))

    out = pl.pallas_call(
        tail_kernel,
        out_shape=jax.ShapeDtypeStruct((1, ch), jnp.float32),
        grid_spec=pltpu.PrefetchScalarGridSpec(
            num_scalar_prefetch=0,
            grid=(1,),
            in_specs=[
                const_spec((n_split * 2, ch)),   # per-core partial sums
                const_spec((1, ch)),             # u
                const_spec((c1, c1)),            # a1 (group-average matrix, GN1)
                const_spec((1, c1)),             # gamma1
                const_spec((1, c1)),             # beta1
                const_spec((c1, hidden)),        # w1
                const_spec((1, hidden)),         # b1
                const_spec((hidden, hidden)),    # a2 (group-average matrix, GN2)
                const_spec((1, hidden)),         # gamma2
                const_spec((1, hidden)),         # beta2
                const_spec((hidden, ch)),        # w2
                const_spec((1, ch)),             # b2
            ],
            out_specs=const_spec((1, ch)),
            scratch_shapes=[pltpu.VMEM((1, c1), jnp.float32)],   # h assembly scratch
        ),
    )(partials.reshape(n_split * 2, ch), u.astype(jnp.float32),
      params["a1"], params["gamma1"], params["beta1"], params["w1"], params["b1"],
      params["a2"], params["gamma2"], params["beta2"], params["w2"], params["b2"])
    return out


# ----------------------------- pure-JAX reference -----------------------------

def reference(x, edge_attr, u, params, eps=1e-5):
    def gn(h, num_groups, gamma, beta):
        B, C = h.shape
        hg = h.reshape(B, num_groups, C // num_groups)
        mu = hg.mean(-1, keepdims=True)
        var = hg.var(-1, keepdims=True)
        hn = ((hg - mu) / jnp.sqrt(var + eps)).reshape(B, C)
        return hn * gamma + beta

    h = jnp.concatenate(
        [u, x.mean(0, keepdims=True), edge_attr.mean(0, keepdims=True)], axis=1)
    h = jnp.maximum(gn(h, params["g1_groups"], params["gamma1"], params["beta1"]), 0.0)
    z = h @ params["w1"] + params["b1"]
    z = jnp.maximum(gn(z, params["g2_groups"], params["gamma2"], params["beta2"]), 0.0)
    out = z @ params["w2"] + params["b2"]
    return out + u


def make_params(key, ch, hidden_ch):
    c1 = 3 * ch
    g1_groups = get_group_size(c1, 24)        # nn.GroupNorm(getGroupSize(3*ch, 24), 3*ch)
    g2_groups = get_group_size(hidden_ch, 8)  # nn.GroupNorm(getGroupSize(hidden_ch), hidden_ch)
    k1, k2, k3, k4 = jax.random.split(key, 4)
    params = {
        "a1": group_avg_matrix(c1, g1_groups),
        "gamma1": jnp.ones((1, c1), jnp.float32),
        "beta1": jnp.zeros((1, c1), jnp.float32),
        "w1": jax.random.normal(k1, (c1, hidden_ch), jnp.float32) * (1.0 / c1 ** 0.5),
        "b1": jax.random.normal(k2, (1, hidden_ch), jnp.float32) * 0.01,
        "a2": group_avg_matrix(hidden_ch, g2_groups),
        "gamma2": jnp.ones((1, hidden_ch), jnp.float32),
        "beta2": jnp.zeros((1, hidden_ch), jnp.float32),
        "w2": jax.random.normal(k3, (hidden_ch, ch), jnp.float32) * (1.0 / hidden_ch ** 0.5),
        "b2": jax.random.normal(k4, (1, ch), jnp.float32) * 0.01,
        "g1_groups": g1_groups,
        "g2_groups": g2_groups,
    }
    return params


if __name__ == "__main__":
    ch = 16          # node / edge / global feature channels
    hidden_ch = 32
    n_nodes = 137
    n_edges = 61

    key = jax.random.PRNGKey(0)
    kx, ke, ku, kp = jax.random.split(key, 4)
    x = jax.random.normal(kx, (n_nodes, ch), jnp.float32)
    edge_attr = jax.random.normal(ke, (n_edges, ch), jnp.float32)
    u = jax.random.normal(ku, (1, ch), jnp.float32)
    params = make_params(kp, ch, hidden_ch)

    ref = jax.block_until_ready(reference(x, edge_attr, u, params))

    # default config: each stream fits in a single (full-dim) block
    out = jax.block_until_ready(global_avg_func(x, edge_attr, u, params))
    assert out.shape == (1, ch), out.shape
    assert jnp.allclose(out, ref, rtol=1e-4, atol=1e-4), (out, ref)

    # tiny tiles: exercises multi-tile streaming, ragged final blocks, the clamped
    # index map for the shorter (edge) stream, and the 2-way core split of the grid
    out2 = jax.block_until_ready(
        global_avg_func(x, edge_attr, u, params, max_tile_bytes=4096))
    assert jnp.allclose(out2, ref, rtol=1e-4, atol=1e-4), (out2, ref)

    print("KERNEL_OK")
</pallas_src>

<mosaic_0001>
module attributes {stable_mosaic.version = 11 : i64} {
  func.func @stream_sum_kernel(%arg0: i32, %arg1: i32, %arg2: memref<137x16xf32, #tpu.memory_space<vmem>>, %arg3: memref<61x16xf32, #tpu.memory_space<vmem>>, %arg4: memref<1x2x16xf32, #tpu.memory_space<vmem>>, %arg5: memref<1x16xf32, #tpu.memory_space<vmem>>, %arg6: memref<1x16xf32, #tpu.memory_space<vmem>>) attributes {dimension_semantics = [#tpu.dimension_semantics<parallel>, #tpu.dimension_semantics<arbitrary>], iteration_bounds = array<i64: 2, 1>, scalar_prefetch = 0 : i64, scratch_operands = 2 : i64, tpu.core_type = #tpu.core_type<tc>, window_params = [{transform_indices = @transform_0, window_bounds = array<i64: 137, 16>}, {transform_indices = @transform_1, window_bounds = array<i64: 61, 16>}, {transform_indices = @transform_2, window_bounds = array<i64: 1, 2, 16>}]} {
    %c1_i32 = arith.constant 1 : i32
    %0 = arith.muli %arg0, %c1_i32 : i32
    %1 = arith.addi %0, %arg1 : i32
    %c0_i32 = arith.constant 0 : i32
    %2 = arith.cmpi eq, %arg1, %c0_i32 : i32
    %3 = arith.extui %2 : i1 to i32
    %c0_i32_0 = arith.constant 0 : i32
    %4 = arith.cmpi ne, %3, %c0_i32_0 : i32
    scf.if %4 {
      %cst = arith.constant 0.000000e+00 : f32
      %20 = vector.broadcast %cst : f32 to vector<1x16xf32>
      %c0 = arith.constant 0 : index
      %c0_11 = arith.constant 0 : index
      %21 = vector.load %arg5[%c0, %c0_11] : memref<1x16xf32, #tpu.memory_space<vmem>>, vector<1x16xf32>
      tpu.vector_store %arg5[%c0, %c0_11], %20 {strides = array<i32>} : memref<1x16xf32, #tpu.memory_space<vmem>>, vector<1x16xf32>,
      %cst_12 = arith.constant 0.000000e+00 : f32
      %22 = vector.broadcast %cst_12 : f32 to vector<1x16xf32>
      %c0_13 = arith.constant 0 : index
      %c0_14 = arith.constant 0 : index
      %23 = vector.load %arg6[%c0_13, %c0_14] : memref<1x16xf32, #tpu.memory_space<vmem>>, vector<1x16xf32>
      tpu.vector_store %arg6[%c0_13, %c0_14], %22 {strides = array<i32>} : memref<1x16xf32, #tpu.memory_space<vmem>>, vector<1x16xf32>,
    } else {
    }
    %c0_i32_1 = arith.constant 0 : i32
    %5 = arith.cmpi slt, %1, %c0_i32_1 : i32
    %6 = arith.extui %5 : i1 to i32
    %c0_i32_2 = arith.constant 0 : i32
    %7 = arith.cmpi ne, %6, %c0_i32_2 : i32
    scf.if %7 {
      %c0 = arith.constant 0 : index
      %c0_11 = arith.constant 0 : index
      %20 = vector.load %arg5[%c0, %c0_11] : memref<1x16xf32, #tpu.memory_space<vmem>>, vector<1x16xf32>
      %c0_12 = arith.constant 0 : index
      %c0_13 = arith.constant 0 : index
      %21 = vector.load %arg2[%c0_12, %c0_13] : memref<137x16xf32, #tpu.memory_space<vmem>>, vector<137x16xf32>
      %cst = arith.constant dense<0.000000e+00> : vector<16xf32>
      %22 = vector.multi_reduction <add>, %21, %cst [0] : vector<137x16xf32> to vector<16xf32>
      %23 = vector.shape_cast %22 : vector<16xf32> to vector<1x16xf32>
      %24 = arith.addf %20, %23 : vector<1x16xf32>
      %c0_14 = arith.constant 0 : index
      %c0_15 = arith.constant 0 : index
      %25 = vector.load %arg5[%c0_14, %c0_15] : memref<1x16xf32, #tpu.memory_space<vmem>>, vector<1x16xf32>
      tpu.vector_store %arg5[%c0_14, %c0_15], %24 {strides = array<i32>} : memref<1x16xf32, #tpu.memory_space<vmem>>, vector<1x16xf32>,
    } else {
    }
    %c0_i32_3 = arith.constant 0 : i32
    %8 = arith.cmpi eq, %1, %c0_i32_3 : i32
    %9 = arith.extui %8 : i1 to i32
    %c0_i32_4 = arith.constant 0 : i32
    %10 = arith.cmpi ne, %9, %c0_i32_4 : i32
    scf.if %10 {
      %c0 = arith.constant 0 : index
      %c0_11 = arith.constant 0 : index
      %20 = vector.load %arg2[%c0, %c0_11] : memref<137x16xf32, #tpu.memory_space<vmem>>, vector<137x16xf32>
      %c0_12 = arith.constant 0 : index
      %c0_13 = arith.constant 0 : index
      %21 = vector.load %arg5[%c0_12, %c0_13] : memref<1x16xf32, #tpu.memory_space<vmem>>, vector<1x16xf32>
      %cst = arith.constant dense<0.000000e+00> : vector<16xf32>
      %22 = vector.multi_reduction <add>, %20, %cst [0] : vector<137x16xf32> to vector<16xf32>
      %23 = vector.shape_cast %22 : vector<16xf32> to vector<1x16xf32>
      %24 = arith.addf %21, %23 : vector<1x16xf32>
      %c0_14 = arith.constant 0 : index
      %c0_15 = arith.constant 0 : index
      %25 = vector.load %arg5[%c0_14, %c0_15] : memref<1x16xf32, #tpu.memory_space<vmem>>, vector<1x16xf32>
      tpu.vector_store %arg5[%c0_14, %c0_15], %24 {strides = array<i32>} : memref<1x16xf32, #tpu.memory_space<vmem>>, vector<1x16xf32>,
    } else {
    }
    %c0_i32_5 = arith.constant 0 : i32
    %11 = arith.cmpi slt, %1, %c0_i32_5 : i32
    %12 = arith.extui %11 : i1 to i32
    %c0_i32_6 = arith.constant 0 : i32
    %13 = arith.cmpi ne, %12, %c0_i32_6 : i32
    scf.if %13 {
      %c0 = arith.constant 0 : index
      %c0_11 = arith.constant 0 : index
      %20 = vector.load %arg6[%c0, %c0_11] : memref<1x16xf32, #tpu.memory_space<vmem>>, vector<1x16xf32>
      %c0_12 = arith.constant 0 : index
      %c0_13 = arith.constant 0 : index
      %21 = vector.load %arg3[%c0_12, %c0_13] : memref<61x16xf32, #tpu.memory_space<vmem>>, vector<61x16xf32>
      %cst = arith.constant dense<0.000000e+00> : vector<16xf32>
      %22 = vector.multi_reduction <add>, %21, %cst [0] : vector<61x16xf32> to vector<16xf32>
      %23 = vector.shape_cast %22 : vector<16xf32> to vector<1x16xf32>
      %24 = arith.addf %20, %23 : vector<1x16xf32>
      %c0_14 = arith.constant 0 : index
      %c0_15 = arith.constant 0 : index
      %25 = vector.load %arg6[%c0_14, %c0_15] : memref<1x16xf32, #tpu.memory_space<vmem>>, vector<1x16xf32>
      tpu.vector_store %arg6[%c0_14, %c0_15], %24 {strides = array<i32>} : memref<1x16xf32, #tpu.memory_space<vmem>>, vector<1x16xf32>,
    } else {
    }
    %c0_i32_7 = arith.constant 0 : i32
    %14 = arith.cmpi eq, %1, %c0_i32_7 : i32
    %15 = arith.extui %14 : i1 to i32
    %c0_i32_8 = arith.constant 0 : i32
    %16 = arith.cmpi ne, %15, %c0_i32_8 : i32
    scf.if %16 {
      %c0 = arith.constant 0 : index
      %c0_11 = arith.constant 0 : index
      %20 = vector.load %arg3[%c0, %c0_11] : memref<61x16xf32, #tpu.memory_space<vmem>>, vector<61x16xf32>
      %c0_12 = arith.constant 0 : index
      %c0_13 = arith.constant 0 : index
      %21 = vector.load %arg6[%c0_12, %c0_13] : memref<1x16xf32, #tpu.memory_space<vmem>>, vector<1x16xf32>
      %cst = arith.constant dense<0.000000e+00> : vector<16xf32>
      %22 = vector.multi_reduction <add>, %20, %cst [0] : vector<61x16xf32> to vector<16xf32>
      %23 = vector.shape_cast %22 : vector<16xf32> to vector<1x16xf32>
      %24 = arith.addf %21, %23 : vector<1x16xf32>
      %c0_14 = arith.constant 0 : index
      %c0_15 = arith.constant 0 : index
      %25 = vector.load %arg6[%c0_14, %c0_15] : memref<1x16xf32, #tpu.memory_space<vmem>>, vector<1x16xf32>
      tpu.vector_store %arg6[%c0_14, %c0_15], %24 {strides = array<i32>} : memref<1x16xf32, #tpu.memory_space<vmem>>, vector<1x16xf32>,
    } else {
    }
    %c0_i32_9 = arith.constant 0 : i32
    %17 = arith.cmpi eq, %arg1, %c0_i32_9 : i32
    %18 = arith.extui %17 : i1 to i32
    %c0_i32_10 = arith.constant 0 : i32
    %19 = arith.cmpi ne, %18, %c0_i32_10 : i32
    scf.if %19 {
      %c0 = arith.constant 0 : index
      %c0_11 = arith.constant 0 : index
      %20 = vector.load %arg5[%c0, %c0_11] : memref<1x16xf32, #tpu.memory_space<vmem>>, vector<1x16xf32>
      %c0_12 = arith.constant 0 : index
      %c0_13 = arith.constant 0 : index
      %c0_14 = arith.constant 0 : index
      %21 = vector.load %arg4[%c0_12, %c0_13, %c0_14] : memref<1x2x16xf32, #tpu.memory_space<vmem>>, vector<1x1x16xf32>
      %22 = vector.shape_cast %21 : vector<1x1x16xf32> to vector<1x16xf32>
      %23 = vector.shape_cast %20 : vector<1x16xf32> to vector<1x1x16xf32>
      tpu.vector_store %arg4[%c0_12, %c0_13, %c0_14], %23 {strides = array<i32>} : memref<1x2x16xf32, #tpu.memory_space<vmem>>, vector<1x1x16xf32>,
      %c0_15 = arith.constant 0 : index
      %c0_16 = arith.constant 0 : index
      %24 = vector.load %arg6[%c0_15, %c0_16] : memref<1x16xf32, #tpu.memory_space<vmem>>, vector<1x16xf32>
      %c0_17 = arith.constant 0 : index
      %c1 = arith.constant 1 : index
      %c0_18 = arith.constant 0 : index
      %25 = vector.load %arg4[%c0_17, %c1, %c0_18] : memref<1x2x16xf32, #tpu.memory_space<vmem>>, vector<1x1x16xf32>
      %26 = vector.shape_cast %25 : vector<1x1x16xf32> to vector<1x16xf32>
      %27 = vector.shape_cast %24 : vector<1x16xf32> to vector<1x1x16xf32>
      tpu.vector_store %arg4[%c0_17, %c1, %c0_18], %27 {strides = array<i32>} : memref<1x2x16xf32, #tpu.memory_space<vmem>>, vector<1x1x16xf32>,
    } else {
    }
    return
  }
  func.func @transform_0(%arg0: i32, %arg1: i32) -> (i32, i32) {
    %c1_i32 = arith.constant 1 : i32
    %0 = arith.muli %arg0, %c1_i32 : i32
    %1 = arith.addi %0, %arg1 : i32
    %c0_i32 = arith.constant 0 : i32
    %2 = arith.minsi %1, %c0_i32 : i32
    %c0_i32_0 = arith.constant 0 : i32
    %c0_i32_1 = arith.constant 0 : i32
    return %2, %c0_i32_0 : i32, i32
  }
  func.func @transform_1(%arg0: i32, %arg1: i32) -> (i32, i32) {
    %c1_i32 = arith.constant 1 : i32
    %0 = arith.muli %arg0, %c1_i32 : i32
    %1 = arith.addi %0, %arg1 : i32
    %c0_i32 = arith.constant 0 : i32
    %2 = arith.minsi %1, %c0_i32 : i32
    %c0_i32_0 = arith.constant 0 : i32
    %c0_i32_1 = arith.constant 0 : i32
    return %2, %c0_i32_0 : i32, i32
  }
  func.func @transform_2(%arg0: i32, %arg1: i32) -> (i32, i32, i32) {
    %c0_i32 = arith.constant 0 : i32
    %c0_i32_0 = arith.constant 0 : i32
    %c0_i32_1 = arith.constant 0 : i32
    return %arg0, %c0_i32, %c0_i32_0 : i32, i32, i32
  }
}

</mosaic_0001>

<llo_original>
// kernel: tpu_custom_call.1
$region0: #{tpu_custom_call.1}
  #allocation0 [shape = 'u32[]', space=smem, size = 0x4, offset = 0x4, fixed_abs, tag = 'smem constant byte address 0x4 - core index']
  #allocation1 [shape = 'u32[144,128]{1,0:T(1,128)}', space=vmem, size = 0x12000, scoped, tag = 'internal scratch']
  #allocation2 [shape = 'f32[1,16]{1,0:T(1,128)}', space=vmem, size = 0x200, scoped, tag = 'scratch operand']
  #allocation3 [shape = 'f32[1,16]{1,0:T(1,128)}', space=vmem, size = 0x200, scoped, tag = 'scratch operand']
  %s0 = inlined_call_operand.vmem [shape: f32[137,16], index: 0, kind: input, shape index: {}]
  %s1 = inlined_call_operand.vmem [shape: f32[61,16], index: 1, kind: input, shape index: {}]
  %s2 = inlined_call_operand.hbm [shape: f32[2,2,16], index: 2, kind: output, shape index: {}]
  %s3 = sld [smem:[#allocation0]]
  $region65: #{tpu_custom_call.1} parent=0
    _
  %s5 = ssub.s32 1, %s3
  %s6 = scalar_select 0, %s5, %s3
  $region1: #{tpu_custom_call.1} parent=0
    #allocation4 [shape = 'u8[2048]{0}', space=vmem, size = 0x800, scoped, tag = 'output window, operand 0']
    #allocation5 [shape = 's32[2]{0}', space=sflag, size = 0x8, scoped, tag = 'scoped memory for tpu_custom_call.1']
    %7 = vsyncpa [#allocation5], 0
    %s8 = scalar_lea.sflag [#allocation5], 1
    %9 = vsyncpa %s8, 0
    loop: start=0, step=1, limit=4
    $region2: #{tpu_custom_call.1} parent=1 // loop_pre_header
      _
    $region3: #{tpu_custom_call.1} parent=1 // loop_header
      %s11 = sphi 0, %s15
      %p12 = scmp.ge.s32.totalorder %s11, 4
      %s18 = sphi 0, %s30
      %s19 = sphi 0, %s26
      %s20 = sphi 0, %s18
      %s21 = sphi 0, %s19
      %s22 = sphi 0, %s20
      %s23 = sphi 0, %s21
      %s39 = sphi 0, %s41
      %s42 = sphi 0, %s39
      %s43 = sphi 0, %s42
      %s59 = sphi 0, %s43
      %s71 = sphi 0, %s73
      %s74 = sphi 0, %s71
      %s75 = sphi 0, %s74
      %s91 = sphi 0, %s75
      %s97 = sphi 0, %s99
      %s100 = sphi 0, %s97
      %s101 = sphi 0, %s100
      %s117 = sphi 0, %s101
    $region4: #{tpu_custom_call.1} parent=1 // loop_header_branch
      %14 = sbr.rel (%p12) target = $region8
    $region5: #{tpu_custom_call.1} parent=1 // loop_body
      %s16 = ssub.s32 %s11, 1
      %s17 = ssub.s32 %s11, 2
      %s24 = sadd.s32 1, %s19
      %p25 = scmp.ge.s32.totalorder %s24, 1
      %s26 = scalar_select %p25, 0, %s24
      %s27 = sadd.s32 1, %s18
      %s28 = scalar_select %p25, %s27, %s18
      %p29 = scmp.ge.s32.totalorder %s28, 2
      %s30 = scalar_select %p29, 0, %s28
      %s31 = sadd.s32 %s18, %s19
      %p32 = scmp.lt.s32.totalorder %s31, 0
      %s33 = scalar_select %p32, %s31, 0
      %s34 = sadd.s32 %s30, %s26
      %p35 = scmp.lt.s32.totalorder %s34, 0
      %s36 = scalar_select %p35, %s34, 0
      %s37 = ssub.s32 %s33, %s36
      %p38 = scmp.eq.s32.totalorder %s37, 0
      %s40 = sadd.s32 %s39, 1
      %s41 = scalar_select %p38, %s39, %s40
      %p44 = pneg %p38
      %p45 = scmp.eq.s32.totalorder %s11, 1
      %p46 = por %p44, %p45
      %p47 = scmp.ne.s32.totalorder %s39, %s42
      %p48 = scmp.eq.s32.totalorder %s11, 0
      %p49 = por %p47, %p48
      %p50 = scmp.ne.s32.totalorder %s39, %s42
      %p51 = scmp.eq.s32.totalorder %s16, 1
      %p52 = por %p50, %p51
      %p53 = scmp.ne.s32.totalorder %s42, %s43
      %p54 = scmp.eq.s32.totalorder %s16, 0
      %p55 = por %p53, %p54
      %p56 = scmp.ne.s32.totalorder %s42, %s43
      %p57 = scmp.eq.s32.totalorder %s17, 1
      %p58 = por %p56, %p57
      %p60 = scmp.ne.s32.totalorder %s43, %s59
      %p61 = scmp.eq.s32.totalorder %s17, 0
      %p62 = por %p60, %p61
      %s63 = sadd.s32 %s18, %s19
      %p64 = scmp.lt.s32.totalorder %s63, 0
      %s65 = scalar_select %p64, %s63, 0
      %s66 = sadd.s32 %s30, %s26
      %p67 = scmp.lt.s32.totalorder %s66, 0
      %s68 = scalar_select %p67, %s66, 0
      %s69 = ssub.s32 %s65, %s68
      %p70 = scmp.eq.s32.totalorder %s69, 0
      %s72 = sadd.s32 %s71, 1
      %s73 = scalar_select %p70, %s71, %s72
      %p76 = pneg %p70
      %p77 = scmp.eq.s32.totalorder %s11, 1
      %p78 = por %p76, %p77
      %p79 = scmp.ne.s32.totalorder %s71, %s74
      %p80 = scmp.eq.s32.totalorder %s11, 0
      %p81 = por %p79, %p80
      %p82 = scmp.ne.s32.totalorder %s71, %s74
      %p83 = scmp.eq.s32.totalorder %s16, 1
      %p84 = por %p82, %p83
      %p85 = scmp.ne.s32.totalorder %s74, %s75
      %p86 = scmp.eq.s32.totalorder %s16, 0
      %p87 = por %p85, %p86
      %p88 = scmp.ne.s32.totalorder %s74, %s75
      %p89 = scmp.eq.s32.totalorder %s17, 1
      %p90 = por %p88, %p89
      %p92 = scmp.ne.s32.totalorder %s75, %s91
      %p93 = scmp.eq.s32.totalorder %s17, 0
      %p94 = por %p92, %p93
      %s95 = ssub.s32 %s18, %s30
      %p96 = scmp.eq.s32.totalorder %s95, 0
      %s98 = sadd.s32 %s97, 1
      %s99 = scalar_select %p96, %s97, %s98
      %p102 = pneg %p96
      %p103 = scmp.eq.s32.totalorder %s11, 1
      %p104 = por %p102, %p103
      %p105 = scmp.ne.s32.totalorder %s97, %s100
      %p106 = scmp.eq.s32.totalorder %s11, 0
      %p107 = por %p105, %p106
      %p108 = scmp.ne.s32.totalorder %s97, %s100
      %p109 = scmp.eq.s32.totalorder %s16, 1
      %p110 = por %p108, %p109
      %p111 = scmp.ne.s32.totalorder %s100, %s101
      %p112 = scmp.eq.s32.totalorder %s16, 0
      %p113 = por %p111, %p112
      %p114 = scmp.ne.s32.totalorder %s100, %s101
      %p115 = scmp.eq.s32.totalorder %s17, 1
      %p116 = por %p114, %p115
      %p118 = scmp.ne.s32.totalorder %s101, %s117
      %p119 = scmp.eq.s32.totalorder %s17, 0
      %p120 = por %p118, %p119
      %p121 = scmp.le.s32.totalorder 1, %s11
      %p122 = scmp.lt.s32.totalorder %s11, 3
      %p123 = pnand %p121, %p122
      %p124 = pneg %p123
      // Predicated region
      $region9: #{tpu_custom_call.1} parent=5 // pred_check
        _
      $region10: #{tpu_custom_call.1} parent=5 // pred_check_branch
        %126 = sbr.rel (%p123) target = $region12
      $region11: #{tpu_custom_call.1} parent=5 // pred_region
        %s127 = ssub.s32 %s11, 1
      $region12: #{tpu_custom_call.1} parent=5 // pred_fallthru
        _
      %p128 = scmp.lt.s32.totalorder %s11, 2
      // Predicated region
      $region13: #{tpu_custom_call.1} parent=5 // pred_check
        %p129 = pneg %p128
      $region14: #{tpu_custom_call.1} parent=5 // pred_check_branch
        %131 = sbr.rel (%p129) target = $region16
      $region15: #{tpu_custom_call.1} parent=5 // pred_region
        // Predicated region
        $region17: #{tpu_custom_call.1} parent=15 // pred_check
          %p132 = pneg %p49
        $region18: #{tpu_custom_call.1} parent=15 // pred_check_branch
          %134 = sbr.rel (%p132) target = $region20
        $region19: #{tpu_custom_call.1} parent=15 // pred_region
          %s135 = sadd.s32 %s18, %s19
          %p136 = scmp.lt.s32.totalorder %s135, 0
          %s137 = scalar_select %p136, %s135, 0
          %s138 = smul.u32 18, %s137
          %p139 = scmp.lt.s32.totalorder %s138, 17
          %s140 = scalar_select %p139, %s138, 17
          %s141 = smul.addr %s140, 8
          %s142 = scalar_lea.vmem %s0, %s141
          %s143 = sadd.s32 %s18, %s19
          %p144 = scmp.lt.s32.totalorder %s143, 0
          %s145 = scalar_select %p144, %s143, 0
          %s146 = smul.u32 18, %s145
        $region20: #{tpu_custom_call.1} parent=15 // pred_fallthru
          _
        // Predicated region
        $region21: #{tpu_custom_call.1} parent=15 // pred_check
          %p147 = pneg %p81
        $region22: #{tpu_custom_call.1} parent=15 // pred_check_branch
          %149 = sbr.rel (%p147) target = $region24
        $region23: #{tpu_custom_call.1} parent=15 // pred_region
          %s150 = sadd.s32 %s18, %s19
          %p151 = scmp.lt.s32.totalorder %s150, 0
          %s152 = scalar_select %p151, %s150, 0
          %s153 = smul.u32 8, %s152
          %p154 = scmp.lt.s32.totalorder %s153, 7
          %s155 = scalar_select %p154, %s153, 7
          %s156 = smul.addr %s155, 8
          %s157 = scalar_lea.vmem %s1, %s156
          %s158 = sadd.s32 %s18, %s19
          %p159 = scmp.lt.s32.totalorder %s158, 0
          %s160 = scalar_select %p159, %s158, 0
          %s161 = smul.u32 8, %s160
        $region24: #{tpu_custom_call.1} parent=15 // pred_fallthru
          _
      $region16: #{tpu_custom_call.1} parent=5 // pred_fallthru
        _
      %p162 = scmp.le.s32.totalorder 1, %s11
      %p163 = scmp.lt.s32.totalorder %s11, 3
      %p164 = pnand %p162, %p163
      %p165 = pneg %p164
      // Predicated region
      $region25: #{tpu_custom_call.1} parent=5 // pred_check
        _
      $region26: #{tpu_custom_call.1} parent=5 // pred_check_branch
        %167 = sbr.rel (%p164) target = $region28
      $region27: #{tpu_custom_call.1} parent=5 // pred_region
        %s168 = ssub.s32 %s11, 1
        %s169 = sadd.s32 %s20, %s21
        %p170 = scmp.lt.s32.totalorder %s169, 0
        %s171 = scalar_select %p170, %s169, 0
        %s172 = smul.u32 18, %s171
        %p173 = scmp.lt.s32.totalorder %s172, 17
        %s174 = scalar_select %p173, %s172, 17
        %s175 = smul.addr %s174, 8
        %s176 = scalar_lea.vmem %s0, %s175
        %p177 = pneg %p55
        %p178 = pneg %p52
        %s179 = sadd.s32 %s20, %s21
        %p180 = scmp.lt.s32.totalorder %s179, 0
        %s181 = scalar_select %p180, %s179, 0
        %s182 = smul.u32 8, %s181
        %p183 = scmp.lt.s32.totalorder %s182, 7
        %s184 = scalar_select %p183, %s182, 7
        %s185 = smul.addr %s184, 8
        %s186 = scalar_lea.vmem %s1, %s185
        %p187 = pneg %p87
        %p188 = pneg %p84
        %p189 = pneg %p113
        %p190 = pneg %p110
        %s191 = sand.u32 %s100, 1
        %s192 = scalar_lea.sflag [#allocation5], %s191
        %s193 = sand.u32 %s100, 1
        %s194 = smul.addr %s193, 2
        %s195 = scalar_lea.vmem [#allocation4], %s194
        %s196 = sadd.s32 %s20, %s21
        %p197 = scmp.lt.s32.totalorder %s196, 0
        %s198 = scalar_select %p197, %s196, 0
        %s199 = smul.u32 18, %s198
        %p200 = scmp.lt.s32.totalorder %s199, 17
        %s201 = scalar_select %p200, %s199, 17
        %s202 = smul.addr %s201, 8
        %s203 = scalar_lea.vmem %s0, %s202
        %s204 = sadd.s32 %s20, %s21
        %p205 = scmp.lt.s32.totalorder %s204, 0
        %s206 = scalar_select %p205, %s204, 0
        %s207 = smul.u32 18, %s206
        %s208 = sadd.s32 %s20, %s21
        %p209 = scmp.lt.s32.totalorder %s208, 0
        %s210 = scalar_select %p209, %s208, 0
        %s211 = smul.u32 8, %s210
        %p212 = scmp.lt.s32.totalorder %s211, 7
        %s213 = scalar_select %p212, %s211, 7
        %s214 = smul.addr %s213, 8
        %s215 = scalar_lea.vmem %s1, %s214
        %s216 = sadd.s32 %s20, %s21
        %p217 = scmp.lt.s32.totalorder %s216, 0
        %s218 = scalar_select %p217, %s216, 0
        %s219 = smul.u32 8, %s218
        %s220 = sadd.s32 %s20, %s21
        %p221 = scmp.eq.s32.totalorder %s21, 0
        // Predicated region
        $region29: #{tpu_custom_call.1} parent=27 // pred_check
          %p222 = pneg %p221
        $region30: #{tpu_custom_call.1} parent=27 // pred_check_branch
          %224 = sbr.rel (%p222) target = $region32
        $region31: #{tpu_custom_call.1} parent=27 // pred_region
          %vm225 = vcmask 122880
          %226 = vst.msk [vmem:[#allocation2] sm:$0x1] %vm225, 0.0
          %227 = vst.msk [vmem:[#allocation3] sm:$0x1] %vm225, 0.0
        $region32: #{tpu_custom_call.1} parent=27 // pred_fallthru
          _
        %p228 = scmp.lt.s32.totalorder %s220, 0
        // Predicated region
        $region33: #{tpu_custom_call.1} parent=27 // pred_check
          %p229 = pneg %p228
        $region34: #{tpu_custom_call.1} parent=27 // pred_check_branch
          %231 = sbr.rel (%p229) target = $region36
        $region35: #{tpu_custom_call.1} parent=27 // pred_region
          %v232 = vld [vmem:[#allocation2] sm:$0x1]
          %v233 = vld [vmem:[%s203] sm:$0xff]
          %v234 = vld [vmem:[%s203 + $0x8] sm:$0xff]
          %v235 = vld [vmem:[%s203 + $0x10] sm:$0xff]
          %v236 = vld [vmem:[%s203 + $0x18] sm:$0xff]
          %v237 = vld [vmem:[%s203 + $0x20] sm:$0xff]
          %v238 = vld [vmem:[%s203 + $0x28] sm:$0xff]
          %v239 = vld [vmem:[%s203 + $0x30] sm:$0xff]
          %v240 = vld [vmem:[%s203 + $0x38] sm:$0xff]
          %v241 = vld [vmem:[%s203 + $0x40] sm:$0xff]
          %v242 = vld [vmem:[%s203 + $0x48] sm:$0xff]
          %v243 = vld [vmem:[%s203 + $0x50] sm:$0xff]
          %v244 = vld [vmem:[%s203 + $0x58] sm:$0xff]
          %v245 = vld [vmem:[%s203 + $0x60] sm:$0xff]
          %v246 = vld [vmem:[%s203 + $0x68] sm:$0xff]
          %v247 = vld [vmem:[%s203 + $0x70] sm:$0xff]
          %v248 = vld [vmem:[%s203 + $0x78] sm:$0xff]
          %v249 = vld [vmem:[%s203 + $0x80] sm:$0xff]
          %v250 = vld [vmem:[%s203 + $0x88] sm:$0x1]
          %vm251 = vcmask 130048
          %v252 = vsel %vm251, %v233, 0.0
          %v253 = vsel %vm251, %v234, 0.0
          %v254 = vadd.f32 %v252, %v253
          %v255 = vsel %vm251, %v235, 0.0
          %v256 = vadd.f32 %v254, %v255
          %v257 = vsel %vm251, %v236, 0.0
          %v258 = vadd.f32 %v256, %v257
          %v259 = vsel %vm251, %v237, 0.0
          %v260 = vadd.f32 %v258, %v259
          %v261 = vsel %vm251, %v238, 0.0
          %v262 = vadd.f32 %v260, %v261
          %v263 = vsel %vm251, %v239, 0.0
          %v264 = vadd.f32 %v262, %v263
          %v265 = vsel %vm251, %v240, 0.0
          %v266 = vadd.f32 %v264, %v265
          %v267 = vsel %vm251, %v241, 0.0
          %v268 = vadd.f32 %v266, %v267
          %v269 = vsel %vm251, %v242, 0.0
          %v270 = vadd.f32 %v268, %v269
          %v271 = vsel %vm251, %v243, 0.0
          %v272 = vadd.f32 %v270, %v271
          %v273 = vsel %vm251, %v244, 0.0
          %v274 = vadd.f32 %v272, %v273
          %v275 = vsel %vm251, %v245, 0.0
          %v276 = vadd.f32 %v274, %v275
          %v277 = vsel %vm251, %v246, 0.0
          %v278 = vadd.f32 %v276, %v277
          %v279 = vsel %vm251, %v247, 0.0
          %v280 = vadd.f32 %v278, %v279
          %v281 = vsel %vm251, %v248, 0.0
          %v282 = vadd.f32 %v280, %v281
          %v283 = vsel %vm251, %v249, 0.0
          %v284 = vadd.f32 %v282, %v283
          %vm285 = vcmask 122880
          %v286 = vsel %vm285, %v250, 0.0
          %v287 = vadd.f32 %v284, %v286
          %v288 = vrot.slane %v287, 4
          %v289 = vadd.f32 %v287, %v288
          %v290 = vrot.slane %v289, 2
          %v291 = vadd.f32 %v289, %v290
          %v292 = vrot.slane %v291, 1
          %v293 = vadd.f32 %v291, %v292
          %v294 = vadd.f32 %v232, %v293
          %295 = vst.msk [vmem:[#allocation2] sm:$0x1] %vm285, %v294
        $region36: #{tpu_custom_call.1} parent=27 // pred_fallthru
          _
        %p296 = scmp.eq.s32.totalorder %s220, 0
        // Predicated region
        $region37: #{tpu_custom_call.1} parent=27 // pred_check
          %p297 = pneg %p296
        $region38: #{tpu_custom_call.1} parent=27 // pred_check_branch
          %299 = sbr.rel (%p297) target = $region40
        $region39: #{tpu_custom_call.1} parent=27 // pred_region
          %v300 = vld [vmem:[%s203] sm:$0xff]
          %v301 = vld [vmem:[%s203 + $0x8] sm:$0xff]
          %v302 = vld [vmem:[%s203 + $0x10] sm:$0xff]
          %v303 = vld [vmem:[%s203 + $0x18] sm:$0xff]
          %v304 = vld [vmem:[%s203 + $0x20] sm:$0xff]
          %v305 = vld [vmem:[%s203 + $0x28] sm:$0xff]
          %v306 = vld [vmem:[%s203 + $0x30] sm:$0xff]
          %v307 = vld [vmem:[%s203 + $0x38] sm:$0xff]
          %v308 = vld [vmem:[%s203 + $0x40] sm:$0xff]
          %v309 = vld [vmem:[%s203 + $0x48] sm:$0xff]
          %v310 = vld [vmem:[%s203 + $0x50] sm:$0xff]
          %v311 = vld [vmem:[%s203 + $0x58] sm:$0xff]
          %v312 = vld [vmem:[%s203 + $0x60] sm:$0xff]
          %v313 = vld [vmem:[%s203 + $0x68] sm:$0xff]
          %v314 = vld [vmem:[%s203 + $0x70] sm:$0xff]
          %v315 = vld [vmem:[%s203 + $0x78] sm:$0xff]
          %v316 = vld [vmem:[%s203 + $0x80] sm:$0xff]
          %v317 = vld [vmem:[%s203 + $0x88] sm:$0x1]
          %v318 = vld [vmem:[#allocation2] sm:$0x1]
          %vm319 = vcmask 130048
          %v320 = vsel %vm319, %v300, 0.0
          %v321 = vsel %vm319, %v301, 0.0
          %v322 = vadd.f32 %v320, %v321
          %v323 = vsel %vm319, %v302, 0.0
          %v324 = vadd.f32 %v322, %v323
          %v325 = vsel %vm319, %v303, 0.0
          %v326 = vadd.f32 %v324, %v325
          %v327 = vsel %vm319, %v304, 0.0
          %v328 = vadd.f32 %v326, %v327
          %v329 = vsel %vm319, %v305, 0.0
          %v330 = vadd.f32 %v328, %v329
          %v331 = vsel %vm319, %v306, 0.0
          %v332 = vadd.f32 %v330, %v331
          %v333 = vsel %vm319, %v307, 0.0
          %v334 = vadd.f32 %v332, %v333
          %v335 = vsel %vm319, %v308, 0.0
          %v336 = vadd.f32 %v334, %v335
          %v337 = vsel %vm319, %v309, 0.0
          %v338 = vadd.f32 %v336, %v337
          %v339 = vsel %vm319, %v310, 0.0
          %v340 = vadd.f32 %v338, %v339
          %v341 = vsel %vm319, %v311, 0.0
          %v342 = vadd.f32 %v340, %v341
          %v343 = vsel %vm319, %v312, 0.0
          %v344 = vadd.f32 %v342, %v343
          %v345 = vsel %vm319, %v313, 0.0
          %v346 = vadd.f32 %v344, %v345
          %v347 = vsel %vm319, %v314, 0.0
          %v348 = vadd.f32 %v346, %v347
          %v349 = vsel %vm319, %v315, 0.0
          %v350 = vadd.f32 %v348, %v349
          %v351 = vsel %vm319, %v316, 0.0
          %v352 = vadd.f32 %v350, %v351
          %vm353 = vcmask 122880
          %v354 = vsel %vm353, %v317, 0.0
          %v355 = vadd.f32 %v352, %v354
          %v356 = vrot.slane %v355, 4
          %v357 = vadd.f32 %v355, %v356
          %v358 = vrot.slane %v357, 2
          %v359 = vadd.f32 %v357, %v358
          %v360 = vrot.slane %v359, 1
          %v361 = vadd.f32 %v359, %v360
          %v362 = vadd.f32 %v318, %v361
          %363 = vst.msk [vmem:[#allocation2] sm:$0x1] %vm353, %v362
        $region40: #{tpu_custom_call.1} parent=27 // pred_fallthru
          _
        // Predicated region
        $region41: #{tpu_custom_call.1} parent=27 // pred_check
          %p364 = pneg %p228
        $region42: #{tpu_custom_call.1} parent=27 // pred_check_branch
          %366 = sbr.rel (%p364) target = $region44
        $region43: #{tpu_custom_call.1} parent=27 // pred_region
          %v367 = vld [vmem:[#allocation3] sm:$0x1]
          %v368 = vld [vmem:[%s215] sm:$0xff]
          %v369 = vld [vmem:[%s215 + $0x8] sm:$0xff]
          %v370 = vld [vmem:[%s215 + $0x10] sm:$0xff]
          %v371 = vld [vmem:[%s215 + $0x18] sm:$0xff]
          %v372 = vld [vmem:[%s215 + $0x20] sm:$0xff]
          %v373 = vld [vmem:[%s215 + $0x28] sm:$0xff]
          %v374 = vld [vmem:[%s215 + $0x30] sm:$0xff]
          %v375 = vld [vmem:[%s215 + $0x38] sm:$0x1f]
          %vm376 = vcmask 130048
          %v377 = vsel %vm376, %v368, 0.0
          %v378 = vsel %vm376, %v369, 0.0
          %v379 = vadd.f32 %v377, %v378
          %v380 = vsel %vm376, %v370, 0.0
          %v381 = vadd.f32 %v379, %v380
          %v382 = vsel %vm376, %v371, 0.0
          %v383 = vadd.f32 %v381, %v382
          %v384 = vsel %vm376, %v372, 0.0
          %v385 = vadd.f32 %v383, %v384
          %v386 = vsel %vm376, %v373, 0.0
          %v387 = vadd.f32 %v385, %v386
          %v388 = vsel %vm376, %v374, 0.0
          %v389 = vadd.f32 %v387, %v388
          %vm390 = vcmask 126976
          %v391 = vsel %vm390, %v375, 0.0
          %v392 = vadd.f32 %v389, %v391
          %v393 = vrot.slane %v392, 4
          %v394 = vadd.f32 %v392, %v393
          %v395 = vrot.slane %v394, 2
          %v396 = vadd.f32 %v394, %v395
          %v397 = vrot.slane %v396, 1
          %v398 = vadd.f32 %v396, %v397
          %v399 = vadd.f32 %v367, %v398
          %vm400 = vcmask 122880
          %401 = vst.msk [vmem:[#allocation3] sm:$0x1] %vm400, %v399
        $region44: #{tpu_custom_call.1} parent=27 // pred_fallthru
          _
        // Predicated region
        $region45: #{tpu_custom_call.1} parent=27 // pred_check
          %p402 = pneg %p296
        $region46: #{tpu_custom_call.1} parent=27 // pred_check_branch
          %404 = sbr.rel (%p402) target = $region48
        $region47: #{tpu_custom_call.1} parent=27 // pred_region
          %v405 = vld [vmem:[%s215] sm:$0xff]
          %v406 = vld [vmem:[%s215 + $0x8] sm:$0xff]
          %v407 = vld [vmem:[%s215 + $0x10] sm:$0xff]
          %v408 = vld [vmem:[%s215 + $0x18] sm:$0xff]
          %v409 = vld [vmem:[%s215 + $0x20] sm:$0xff]
          %v410 = vld [vmem:[%s215 + $0x28] sm:$0xff]
          %v411 = vld [vmem:[%s215 + $0x30] sm:$0xff]
          %v412 = vld [vmem:[%s215 + $0x38] sm:$0x1f]
          %v413 = vld [vmem:[#allocation3] sm:$0x1]
          %vm414 = vcmask 130048
          %v415 = vsel %vm414, %v405, 0.0
          %v416 = vsel %vm414, %v406, 0.0
          %v417 = vadd.f32 %v415, %v416
          %v418 = vsel %vm414, %v407, 0.0
          %v419 = vadd.f32 %v417, %v418
          %v420 = vsel %vm414, %v408, 0.0
          %v421 = vadd.f32 %v419, %v420
          %v422 = vsel %vm414, %v409, 0.0
          %v423 = vadd.f32 %v421, %v422
          %v424 = vsel %vm414, %v410, 0.0
          %v425 = vadd.f32 %v423, %v424
          %v426 = vsel %vm414, %v411, 0.0
          %v427 = vadd.f32 %v425, %v426
          %vm428 = vcmask 126976
          %v429 = vsel %vm428, %v412, 0.0
          %v430 = vadd.f32 %v427, %v429
          %v431 = vrot.slane %v430, 4
          %v432 = vadd.f32 %v430, %v431
          %v433 = vrot.slane %v432, 2
          %v434 = vadd.f32 %v432, %v433
          %v435 = vrot.slane %v434, 1
          %v436 = vadd.f32 %v434, %v435
          %v437 = vadd.f32 %v413, %v436
          %vm438 = vcmask 122880
          %439 = vst.msk [vmem:[#allocation3] sm:$0x1] %vm438, %v437
        $region48: #{tpu_custom_call.1} parent=27 // pred_fallthru
          _
        // Predicated region
        $region49: #{tpu_custom_call.1} parent=27 // pred_check
          %p440 = pneg %p221
        $region50: #{tpu_custom_call.1} parent=27 // pred_check_branch
          %442 = sbr.rel (%p440) target = $region52
        $region51: #{tpu_custom_call.1} parent=27 // pred_region
          %v443 = vld [vmem:[#allocation2] sm:$0x1]
          %vm444 = vcmask 122880
          %445 = vst.msk [vmem:[%s195] sm:$0x1] %vm444, %v443
          %v446 = vld [vmem:[#allocation3] sm:$0x1]
          %447 = vst.msk [vmem:[%s195 + $0x1] sm:$0x1] %vm444, %v446
        $region52: #{tpu_custom_call.1} parent=27 // pred_fallthru
          _
        %s448 = sand.u32 %s100, 1
        %s449 = scalar_lea.sflag [#allocation5], %s448
        %s450 = sand.u32 %s100, 1
        %s451 = smul.addr %s450, 2
        %s452 = scalar_lea.vmem [#allocation4], %s451
        // Predicated region
        $region53: #{tpu_custom_call.1} parent=27 // pred_check
          %p453 = pneg %p110
        $region54: #{tpu_custom_call.1} parent=27 // pred_check_branch
          %455 = sbr.rel (%p453) target = $region56
        $region55: #{tpu_custom_call.1} parent=27 // pred_region
          %s457 = ssub.s32 32, 32
          %458 = vsyncadd %s449, %s457
          %s459 = smul.addr %s20, 32
          %s460 = scalar_lea.hbm %s2, %s459
          %s462 = sshll.u32 %s452, 4
          %s463 = int_to_ptr.vmem [resolvable:$true] %s462
          %465 = dma.vmem_to_hbm [thread:$0]  %s463, 32, %s460, %s449
        $region56: #{tpu_custom_call.1} parent=27 // pred_fallthru
          _
      $region28: #{tpu_custom_call.1} parent=5 // pred_fallthru
        _
      %p466 = scmp.le.s32.totalorder 2, %s11
      // Predicated region
      $region57: #{tpu_custom_call.1} parent=5 // pred_check
        %p467 = pneg %p466
      $region58: #{tpu_custom_call.1} parent=5 // pred_check_branch
        %469 = sbr.rel (%p467) target = $region60
      $region59: #{tpu_custom_call.1} parent=5 // pred_region
        %s470 = ssub.s32 %s11, 2
        // Predicated region
        $region61: #{tpu_custom_call.1} parent=59 // pred_check
          %p471 = pneg %p116
        $region62: #{tpu_custom_call.1} parent=59 // pred_check_branch
          %473 = sbr.rel (%p471) target = $region64
        $region63: #{tpu_custom_call.1} parent=59 // pred_region
          %s474 = sand.u32 %s101, 1
          %s475 = scalar_lea.sflag [#allocation5], %s474
          %s476 = sand.u32 %s101, 1
          %s477 = smul.addr %s476, 2
          %s478 = scalar_lea.vmem [#allocation4], %s477
          %479 = dma.done %s475, 32
        $region64: #{tpu_custom_call.1} parent=59 // pred_fallthru
          _
      $region60: #{tpu_custom_call.1} parent=5 // pred_fallthru
        _
    $region6: #{tpu_custom_call.1} parent=1 // loop_footer
      %s15 = sadd.s32 1, %s11
    $region7: #{tpu_custom_call.1} parent=1 // loop_footer_branch
      %10 = sbr.rel target = $region3
    $region8: #{tpu_custom_call.1} parent=1 // loop_exit
      _
    %480 = vsyncpa [#allocation5], 1
    %s481 = scalar_lea.sflag [#allocation5], 1
    %482 = vsyncpa %s481, 1

</llo_original>
